<compile_context>
chip_gen: v5e
topology: v5e:2x2
jax: 0.10.0
libtpu: 0.0.40
codegen_flags: <defaults>
</compile_context>

<pallas_src>
import functools

import jax
import jax.numpy as jnp
from jax.experimental import pallas as pl
from jax.experimental.pallas import tpu as pltpu


def _round_up(x, m):
    return ((x + m - 1) // m) * m


# ----------------------------------------------------------------------------
# Fused residual-block kernel (B images per grid step).
# ----------------------------------------------------------------------------
def _residual_block_kernel(x_ref, w1_ref, b1_ref, w2_ref, b2_ref, o_ref,
                           zbuf_ref, col_ref, *, H, W, d, B, c_in, c_mid, halo):
    """conv1(+1x1 shortcut rows) -> conv2(+BN) -> add -> ReLU for B images.

    x_ref   : (B, c_in, HW)          input, channels x flattened spatial
    w1_ref  : (c_mid+c_in, 9*c_in)   conv1 weights (im2col, tap-major) with the
                                     1x1-shortcut matrix appended as extra
                                     output rows in the center-tap columns
    b1_ref  : (c_mid+c_in, 1)        [b1 ; b3]
    w2_ref  : (c_in, 9*c_mid)        conv2 weights with BN scale folded in
    b2_ref  : (c_in, 1)              conv2 bias with BN shift folded in
    o_ref   : (B, c_in, HW)          output
    zbuf_ref: (max(c_in,c_mid), B*(halo+HW+halo)) zero-halo'd flat activations
    col_ref : (9*max(c_in,c_mid), B*HW)           dense im2col slab
    """
    HW = H * W
    seg = 2 * halo + HW
    maxc = max(c_in, c_mid)

    # ---- hoisted edge masks: one iota, two lane masks, per grid step -------
    col_pos = jax.lax.broadcasted_iota(jnp.int32, (maxc, HW), 1) % W
    mask_l = col_pos >= d            # source column valid for ox = -d
    mask_r = col_pos < (W - d)       # source column valid for ox = +d

    # ---- zero ONLY the halo lane-ranges (interiors are overwritten) --------
    # Done every step (not program_id-gated) so each v7x core's private
    # scratch is initialized.  Nothing below writes the halo ranges.
    zero_halo = jnp.zeros((maxc, halo), zbuf_ref.dtype)
    for b in range(B):
        zbuf_ref[:, b * seg: b * seg + halo] = zero_halo
        zbuf_ref[:, b * seg + halo + HW: (b + 1) * seg] = zero_halo

    def conv3x3(get_z, cin, w_flat, b_col):
        # (cin, HW) per image -> (cout, B*HW) via ONE MXU contraction.
        # Dense slab: rows [0 : 9*cin] are all written this step, so the
        # matmul never touches stale / uninitialized VMEM.
        for b in range(B):
            zbuf_ref[0:cin, b * seg + halo: b * seg + halo + HW] = get_z(b)
        for t in range(9):
            dy, dx = t // 3, t % 3
            oy, ox = (dy - 1) * d, (dx - 1) * d
            for b in range(B):
                # Spatial shift (oy, ox) == flat lane shift oy*W + ox.
                # Rows off the image read zeros from the halo; columns that
                # wrap across a row edge are masked (hoisted masks).
                off = b * seg + halo + oy * W + ox
                chunk = zbuf_ref[0:cin, off: off + HW]
                if ox < 0:
                    chunk = jnp.where(mask_l[0:cin], chunk, 0.0)
                elif ox > 0:
                    chunk = jnp.where(mask_r[0:cin], chunk, 0.0)
                col_ref[t * cin: (t + 1) * cin, b * HW: (b + 1) * HW] = chunk
        return jnp.dot(w_flat, col_ref[0: 9 * cin, :],
                       preferred_element_type=jnp.float32) + b_col

    # conv1 + fused 1x1 shortcut: one contraction yields [h ; s].
    hs = conv3x3(lambda b: x_ref[b], c_in, w1_ref[...], b1_ref[...])
    h = hs[0:c_mid, :]               # conv1 output       (c_mid, B*HW)
    s = hs[c_mid:, :]                # 1x1(X) + b3        (c_in,  B*HW)

    # conv2 (+ folded inference BatchNorm).
    y = conv3x3(lambda b: h[:, b * HW: (b + 1) * HW], c_mid,
                w2_ref[...], b2_ref[...])

    out = jnp.maximum(y + s, 0.0)
    for b in range(B):
        o_ref[b] = out[:, b * HW: (b + 1) * HW].astype(o_ref.dtype)


# ----------------------------------------------------------------------------
# Wrapper: weight repacking + single pallas_call.
# ----------------------------------------------------------------------------
def _im2col_weights(w_oihw):
    """(Cout, Cin, 3, 3) OIHW -> (Cout, 9*Cin) dense im2col layout (tap-major)."""
    co, ci, kh, kw = w_oihw.shape
    w = jnp.transpose(w_oihw, (0, 2, 3, 1))              # (co, kh, kw, ci)
    return w.reshape(co, kh * kw * ci).astype(jnp.float32)


def _pick_images_per_step(N, C, Ci, HW, seg):
    """Largest batch per grid step that keeps >=2 steps (both v7x TCs busy)
    and stays well under the scoped-VMEM limit."""
    maxc = max(C, Ci)
    best = 1
    for b in range(1, N + 1):
        if N % b:
            continue
        if N >= 2 and N // b < 2:
            continue
        vmem_est = 4 * b * (9 * maxc * HW + maxc * seg + 4 * C * HW)
        if vmem_est > (8 << 20):
            continue
        best = b
    return best


def residual_forward(x_nchw, params, *, dilation=1, use_1x1conv=True,
                     images_per_step=None):
    """Fused Residual-block forward.  x_nchw: (N, C, H, W) float32."""
    N, C, H, W = x_nchw.shape
    HW = H * W
    Ci = params["w1"].shape[0]
    d = dilation
    halo = _round_up(d * (W + 1), 128)     # flat halo, lane-aligned interior
    seg = 2 * halo + HW

    if images_per_step is None:
        images_per_step = _pick_images_per_step(N, C, Ci, HW, seg)
    B = images_per_step
    assert N % B == 0, "images_per_step must divide the batch"

    x2 = x_nchw.reshape(N, C, HW).astype(jnp.float32)    # free reshape of NCHW

    # conv1 weights + 1x1 shortcut fused as extra output rows (center tap).
    w1f = _im2col_weights(params["w1"])                    # (Ci, 9*C)
    if use_1x1conv:
        w3 = params["w3"].astype(jnp.float32)              # (C, C)
        b3 = params["b3"].astype(jnp.float32)
    else:
        w3 = jnp.eye(C, dtype=jnp.float32)
        b3 = jnp.zeros((C,), jnp.float32)
    w3_rows = jnp.zeros((C, 9 * C), jnp.float32).at[:, 4 * C:5 * C].set(w3)
    w1_ext = jnp.concatenate([w1f, w3_rows], axis=0)       # (Ci+C, 9*C)
    b1_ext = jnp.concatenate(
        [params["b1"].astype(jnp.float32), b3]).reshape(Ci + C, 1)

    # Fold inference BN into conv2: bn(conv2(h)) == (scale*W2) h + (scale*b2 + shift)
    eps = 1e-5
    scale = params["bn_gamma"] / jnp.sqrt(params["bn_var"] + eps)
    shift = params["bn_beta"] - params["bn_mean"] * scale
    w2f = _im2col_weights(params["w2"] * scale[:, None, None, None])  # (C, 9*Ci)
    b2c = (params["b2"] * scale + shift).reshape(C, 1).astype(jnp.float32)

    kernel = functools.partial(_residual_block_kernel, H=H, W=W, d=d, B=B,
                               c_in=C, c_mid=Ci, halo=halo)

    out2 = pl.pallas_call(
        kernel,
        out_shape=jax.ShapeDtypeStruct((N, C, HW), jnp.float32),
        grid=(N // B,),
        in_specs=[
            pl.BlockSpec((B, C, HW), lambda n: (n, 0, 0)),       # x (lane-dense)
            pl.BlockSpec((Ci + C, 9 * C), lambda n: (0, 0)),     # w1 + 1x1 rows
            pl.BlockSpec((Ci + C, 1), lambda n: (0, 0)),         # [b1 ; b3]
            pl.BlockSpec((C, 9 * Ci), lambda n: (0, 0)),         # w2 (BN folded)
            pl.BlockSpec((C, 1), lambda n: (0, 0)),              # b2 (BN folded)
        ],
        out_specs=pl.BlockSpec((B, C, HW), lambda n: (n, 0, 0)),
        scratch_shapes=[
            pltpu.VMEM((max(C, Ci), B * seg), jnp.float32),      # halo buffer
            pltpu.VMEM((9 * max(C, Ci), B * HW), jnp.float32),   # dense im2col
        ],
        compiler_params=pltpu.CompilerParams(
            dimension_semantics=("parallel",)),   # batch splits across TCs (v7x)
    )(x2, w1_ext, b1_ext, w2f, b2c)

    return out2.reshape(N, C, H, W)


# ----------------------------------------------------------------------------
# Pure-JAX reference (sanity check).
# ----------------------------------------------------------------------------
def residual_reference(x_nchw, params, *, dilation=1, use_1x1conv=True):
    def conv(x, w_oihw, b, d):
        k = w_oihw.shape[-1]
        pad = d * (k - 1) // 2
        y = jax.lax.conv_general_dilated(
            x, w_oihw, window_strides=(1, 1), padding=((pad, pad), (pad, pad)),
            rhs_dilation=(d, d),
            dimension_numbers=("NCHW", "OIHW", "NCHW"),
            precision=jax.lax.Precision.HIGHEST)
        return y + b[None, :, None, None]

    y = conv(x_nchw, params["w1"], params["b1"], dilation)
    y = conv(y, params["w2"], params["b2"], dilation)
    eps = 1e-5
    scale = params["bn_gamma"] / jnp.sqrt(params["bn_var"] + eps)
    shift = params["bn_beta"] - params["bn_mean"] * scale
    y = y * scale[None, :, None, None] + shift[None, :, None, None]
    x = x_nchw
    if use_1x1conv:
        x = conv(x, params["w3"][:, :, None, None], params["b3"], 1)
    return jnp.maximum(y + x, 0.0)


if __name__ == "__main__":
    # Small shapes consistent with the module's Residual block.
    N, outer_c, inner_c, H, W = 2, 4, 8, 16, 16
    dilation = 1
    use_1x1conv = True

    key = jax.random.PRNGKey(0)
    ks = jax.random.split(key, 12)
    params = {
        # conv weights in PyTorch OIHW layout (Cout, Cin, kh, kw)
        "w1": 0.1 * jax.random.normal(ks[0], (inner_c, outer_c, 3, 3), jnp.float32),
        "b1": 0.1 * jax.random.normal(ks[1], (inner_c,), jnp.float32),
        "w2": 0.1 * jax.random.normal(ks[2], (outer_c, inner_c, 3, 3), jnp.float32),
        "b2": 0.1 * jax.random.normal(ks[3], (outer_c,), jnp.float32),
        # 1x1 shortcut conv stored as a (Cout, Cin) channel matrix
        "w3": 0.1 * jax.random.normal(ks[4], (outer_c, outer_c), jnp.float32),
        "b3": 0.1 * jax.random.normal(ks[5], (outer_c,), jnp.float32),
        # BatchNorm2d affine params / running stats (inference semantics)
        "bn_gamma": 1.0 + 0.1 * jax.random.normal(ks[6], (outer_c,), jnp.float32),
        "bn_beta": 0.1 * jax.random.normal(ks[7], (outer_c,), jnp.float32),
        "bn_mean": 0.1 * jax.random.normal(ks[8], (outer_c,), jnp.float32),
        "bn_var": jax.random.uniform(ks[9], (outer_c,), jnp.float32, 0.5, 1.5),
    }

    x = jax.random.normal(ks[10], (N, outer_c, H, W), jnp.float32)

    fwd = jax.jit(functools.partial(residual_forward, dilation=dilation,
                                    use_1x1conv=use_1x1conv))
    out = jax.block_until_ready(fwd(x, params))

    ref = residual_reference(x, params, dilation=dilation,
                             use_1x1conv=use_1x1conv)
    assert out.shape == (N, outer_c, H, W)
    err = float(jnp.max(jnp.abs(out - ref)))
    assert jnp.allclose(out, ref, atol=2e-4, rtol=2e-4), err

    print("KERNEL_OK")
</pallas_src>

<mosaic_0001>
module attributes {stable_mosaic.version = 11 : i64} {
  func.func @_residual_block_kernel(%arg0: i32, %arg1: memref<1x4x256xf32, #tpu.memory_space<vmem>>, %arg2: memref<12x36xf32, #tpu.memory_space<vmem>>, %arg3: memref<12x1xf32, #tpu.memory_space<vmem>>, %arg4: memref<4x72xf32, #tpu.memory_space<vmem>>, %arg5: memref<4x1xf32, #tpu.memory_space<vmem>>, %arg6: memref<1x4x256xf32, #tpu.memory_space<vmem>>, %arg7: memref<8x512xf32, #tpu.memory_space<vmem>>, %arg8: memref<72x256xf32, #tpu.memory_space<vmem>>) attributes {dimension_semantics = [#tpu.dimension_semantics<parallel>], iteration_bounds = array<i64: 2>, scalar_prefetch = 0 : i64, scratch_operands = 2 : i64, tpu.core_type = #tpu.core_type<tc>, window_params = [{transform_indices = @transform_0, window_bounds = array<i64: 1, 4, 256>}, {pipeline_mode = #tpu.pipeline_mode<synchronous>, transform_indices = @transform_1, window_bounds = array<i64: 12, 36>}, {pipeline_mode = #tpu.pipeline_mode<synchronous>, transform_indices = @transform_2, window_bounds = array<i64: 12, 1>}, {pipeline_mode = #tpu.pipeline_mode<synchronous>, transform_indices = @transform_3, window_bounds = array<i64: 4, 72>}, {pipeline_mode = #tpu.pipeline_mode<synchronous>, transform_indices = @transform_4, window_bounds = array<i64: 4, 1>}, {transform_indices = @transform_5, window_bounds = array<i64: 1, 4, 256>}]} {
    %0 = tpu.iota {dimensions = array<i32: 1>} : vector<8x256xi32>
    %c16_i32 = arith.constant 16 : i32
    %c0_i32 = arith.constant 0 : i32
    %1 = arith.cmpi eq, %c16_i32, %c0_i32 : i32
    %c1_i32 = arith.constant 1 : i32
    %2 = arith.select %1, %c1_i32, %c16_i32 : i32
    %3 = vector.broadcast %2 : i32 to vector<8x256xi32>
    %4 = arith.remsi %0, %3 : vector<8x256xi32>
    %c0_i32_0 = arith.constant 0 : i32
    %5 = vector.broadcast %c0_i32_0 : i32 to vector<8x256xi32>
    %6 = arith.cmpi ne, %4, %5 : vector<8x256xi32>
    %c0_i32_1 = arith.constant 0 : i32
    %7 = vector.broadcast %c0_i32_1 : i32 to vector<8x256xi32>
    %8 = arith.cmpi slt, %4, %7 : vector<8x256xi32>
    %c0_i32_2 = arith.constant 0 : i32
    %9 = arith.cmpi slt, %2, %c0_i32_2 : i32
    %10 = vector.broadcast %9 : i1 to vector<8x256xi1>
    %11 = vector.broadcast %10 : vector<8x256xi1> to vector<8x256xi1>
    %12 = arith.xori %8, %11 : vector<8x256xi1>
    %13 = arith.andi %12, %6 : vector<8x256xi1>
    %14 = vector.broadcast %2 : i32 to vector<8x256xi32>
    %15 = arith.addi %4, %14 : vector<8x256xi32>
    %16 = arith.select %13, %15, %4 : vector<8x256xi1>, vector<8x256xi32>
    %c1_i32_3 = arith.constant 1 : i32
    %17 = vector.broadcast %c1_i32_3 : i32 to vector<8x256xi32>
    %18 = arith.cmpi sge, %16, %17 : vector<8x256xi32>
    %c15_i32 = arith.constant 15 : i32
    %19 = vector.broadcast %c15_i32 : i32 to vector<8x256xi32>
    %20 = arith.cmpi slt, %16, %19 : vector<8x256xi32>
    %cst = arith.constant 0.000000e+00 : f32
    %21 = vector.broadcast %cst : f32 to vector<8x128xf32>
    %c0 = arith.constant 0 : index
    %c0_4 = arith.constant 0 : index
    %22 = vector.load %arg7[%c0, %c0_4] : memref<8x512xf32, #tpu.memory_space<vmem>>, vector<8x128xf32>
    tpu.vector_store %arg7[%c0, %c0_4], %21 {strides = array<i32>} : memref<8x512xf32, #tpu.memory_space<vmem>>, vector<8x128xf32>,
    %c0_5 = arith.constant 0 : index
    %c384 = arith.constant 384 : index
    %23 = vector.load %arg7[%c0_5, %c384] : memref<8x512xf32, #tpu.memory_space<vmem>>, vector<8x128xf32>
    tpu.vector_store %arg7[%c0_5, %c384], %21 {strides = array<i32>} : memref<8x512xf32, #tpu.memory_space<vmem>>, vector<8x128xf32>,
    %c0_6 = arith.constant 0 : index
    %c0_7 = arith.constant 0 : index
    %24 = vector.load %arg2[%c0_6, %c0_7] : memref<12x36xf32, #tpu.memory_space<vmem>>, vector<12x36xf32>
    %c0_8 = arith.constant 0 : index
    %c0_9 = arith.constant 0 : index
    %25 = vector.load %arg3[%c0_8, %c0_9] : memref<12x1xf32, #tpu.memory_space<vmem>>, vector<12x1xf32>
    %c0_10 = arith.constant 0 : index
    %c0_11 = arith.constant 0 : index
    %c0_12 = arith.constant 0 : index
    %26 = vector.load %arg1[%c0_10, %c0_11, %c0_12] : memref<1x4x256xf32, #tpu.memory_space<vmem>>, vector<1x4x256xf32>
    %27 = vector.shape_cast %26 : vector<1x4x256xf32> to vector<4x256xf32>
    %c0_13 = arith.constant 0 : index
    %c128 = arith.constant 128 : index
    %28 = vector.load %arg7[%c0_13, %c128] : memref<8x512xf32, #tpu.memory_space<vmem>>, vector<4x256xf32>
    tpu.vector_store %arg7[%c0_13, %c128], %27 {strides = array<i32>} : memref<8x512xf32, #tpu.memory_space<vmem>>, vector<4x256xf32>,
    %c0_14 = arith.constant 0 : index
    %c111 = arith.constant 111 : index
    %29 = vector.load %arg7[%c0_14, %c111] : memref<8x512xf32, #tpu.memory_space<vmem>>, vector<4x256xf32>
    %30 = vector.extract_strided_slice %18 {offsets = [0, 0], sizes = [4, 256], strides = [1, 1]} : vector<8x256xi1> to vector<4x256xi1>
    %cst_15 = arith.constant 0.000000e+00 : f32
    %31 = vector.broadcast %cst_15 : f32 to vector<4x256xf32>
    %32 = arith.select %30, %29, %31 : vector<4x256xi1>, vector<4x256xf32>
    %c0_16 = arith.constant 0 : index
    %c0_17 = arith.constant 0 : index
    %33 = vector.load %arg8[%c0_16, %c0_17] : memref<72x256xf32, #tpu.memory_space<vmem>>, vector<4x256xf32>
    tpu.vector_store %arg8[%c0_16, %c0_17], %32 {strides = array<i32>} : memref<72x256xf32, #tpu.memory_space<vmem>>, vector<4x256xf32>,
    %c0_18 = arith.constant 0 : index
    %c112 = arith.constant 112 : index
    %34 = vector.load %arg7[%c0_18, %c112] : memref<8x512xf32, #tpu.memory_space<vmem>>, vector<4x256xf32>
    %c4 = arith.constant 4 : index
    %c0_19 = arith.constant 0 : index
    %35 = vector.load %arg8[%c4, %c0_19] : memref<72x256xf32, #tpu.memory_space<vmem>>, vector<4x256xf32>
    tpu.vector_store %arg8[%c4, %c0_19], %34 {strides = array<i32>} : memref<72x256xf32, #tpu.memory_space<vmem>>, vector<4x256xf32>,
    %c0_20 = arith.constant 0 : index
    %c113 = arith.constant 113 : index
    %36 = vector.load %arg7[%c0_20, %c113] : memref<8x512xf32, #tpu.memory_space<vmem>>, vector<4x256xf32>
    %37 = vector.extract_strided_slice %20 {offsets = [0, 0], sizes = [4, 256], strides = [1, 1]} : vector<8x256xi1> to vector<4x256xi1>
    %cst_21 = arith.constant 0.000000e+00 : f32
    %38 = vector.broadcast %cst_21 : f32 to vector<4x256xf32>
    %39 = arith.select %37, %36, %38 : vector<4x256xi1>, vector<4x256xf32>
    %c8 = arith.constant 8 : index
    %c0_22 = arith.constant 0 : index
    %40 = vector.load %arg8[%c8, %c0_22] : memref<72x256xf32, #tpu.memory_space<vmem>>, vector<4x256xf32>
    tpu.vector_store %arg8[%c8, %c0_22], %39 {strides = array<i32>} : memref<72x256xf32, #tpu.memory_space<vmem>>, vector<4x256xf32>,
    %c0_23 = arith.constant 0 : index
    %c127 = arith.constant 127 : index
    %41 = vector.load %arg7[%c0_23, %c127] : memref<8x512xf32, #tpu.memory_space<vmem>>, vector<4x256xf32>
    %42 = vector.extract_strided_slice %18 {offsets = [0, 0], sizes = [4, 256], strides = [1, 1]} : vector<8x256xi1> to vector<4x256xi1>
    %cst_24 = arith.constant 0.000000e+00 : f32
    %43 = vector.broadcast %cst_24 : f32 to vector<4x256xf32>
    %44 = arith.select %42, %41, %43 : vector<4x256xi1>, vector<4x256xf32>
    %c12 = arith.constant 12 : index
    %c0_25 = arith.constant 0 : index
    %45 = vector.load %arg8[%c12, %c0_25] : memref<72x256xf32, #tpu.memory_space<vmem>>, vector<4x256xf32>
    tpu.vector_store %arg8[%c12, %c0_25], %44 {strides = array<i32>} : memref<72x256xf32, #tpu.memory_space<vmem>>, vector<4x256xf32>,
    %c0_26 = arith.constant 0 : index
    %c128_27 = arith.constant 128 : index
    %46 = vector.load %arg7[%c0_26, %c128_27] : memref<8x512xf32, #tpu.memory_space<vmem>>, vector<4x256xf32>
    %c16 = arith.constant 16 : index
    %c0_28 = arith.constant 0 : index
    %47 = vector.load %arg8[%c16, %c0_28] : memref<72x256xf32, #tpu.memory_space<vmem>>, vector<4x256xf32>
    tpu.vector_store %arg8[%c16, %c0_28], %46 {strides = array<i32>} : memref<72x256xf32, #tpu.memory_space<vmem>>, vector<4x256xf32>,
    %c0_29 = arith.constant 0 : index
    %c129 = arith.constant 129 : index
    %48 = vector.load %arg7[%c0_29, %c129] : memref<8x512xf32, #tpu.memory_space<vmem>>, vector<4x256xf32>
    %49 = vector.extract_strided_slice %20 {offsets = [0, 0], sizes = [4, 256], strides = [1, 1]} : vector<8x256xi1> to vector<4x256xi1>
    %cst_30 = arith.constant 0.000000e+00 : f32
    %50 = vector.broadcast %cst_30 : f32 to vector<4x256xf32>
    %51 = arith.select %49, %48, %50 : vector<4x256xi1>, vector<4x256xf32>
    %c20 = arith.constant 20 : index
    %c0_31 = arith.constant 0 : index
    %52 = vector.load %arg8[%c20, %c0_31] : memref<72x256xf32, #tpu.memory_space<vmem>>, vector<4x256xf32>
    tpu.vector_store %arg8[%c20, %c0_31], %51 {strides = array<i32>} : memref<72x256xf32, #tpu.memory_space<vmem>>, vector<4x256xf32>,
    %c0_32 = arith.constant 0 : index
    %c143 = arith.constant 143 : index
    %53 = vector.load %arg7[%c0_32, %c143] : memref<8x512xf32, #tpu.memory_space<vmem>>, vector<4x256xf32>
    %54 = vector.extract_strided_slice %18 {offsets = [0, 0], sizes = [4, 256], strides = [1, 1]} : vector<8x256xi1> to vector<4x256xi1>
    %cst_33 = arith.constant 0.000000e+00 : f32
    %55 = vector.broadcast %cst_33 : f32 to vector<4x256xf32>
    %56 = arith.select %54, %53, %55 : vector<4x256xi1>, vector<4x256xf32>
    %c24 = arith.constant 24 : index
    %c0_34 = arith.constant 0 : index
    %57 = vector.load %arg8[%c24, %c0_34] : memref<72x256xf32, #tpu.memory_space<vmem>>, vector<4x256xf32>
    tpu.vector_store %arg8[%c24, %c0_34], %56 {strides = array<i32>} : memref<72x256xf32, #tpu.memory_space<vmem>>, vector<4x256xf32>,
    %c0_35 = arith.constant 0 : index
    %c144 = arith.constant 144 : index
    %58 = vector.load %arg7[%c0_35, %c144] : memref<8x512xf32, #tpu.memory_space<vmem>>, vector<4x256xf32>
    %c28 = arith.constant 28 : index
    %c0_36 = arith.constant 0 : index
    %59 = vector.load %arg8[%c28, %c0_36] : memref<72x256xf32, #tpu.memory_space<vmem>>, vector<4x256xf32>
    tpu.vector_store %arg8[%c28, %c0_36], %58 {strides = array<i32>} : memref<72x256xf32, #tpu.memory_space<vmem>>, vector<4x256xf32>,
    %c0_37 = arith.constant 0 : index
    %c145 = arith.constant 145 : index
    %60 = vector.load %arg7[%c0_37, %c145] : memref<8x512xf32, #tpu.memory_space<vmem>>, vector<4x256xf32>
    %61 = vector.extract_strided_slice %20 {offsets = [0, 0], sizes = [4, 256], strides = [1, 1]} : vector<8x256xi1> to vector<4x256xi1>
    %cst_38 = arith.constant 0.000000e+00 : f32
    %62 = vector.broadcast %cst_38 : f32 to vector<4x256xf32>
    %63 = arith.select %61, %60, %62 : vector<4x256xi1>, vector<4x256xf32>
    %c32 = arith.constant 32 : index
    %c0_39 = arith.constant 0 : index
    %64 = vector.load %arg8[%c32, %c0_39] : memref<72x256xf32, #tpu.memory_space<vmem>>, vector<4x256xf32>
    tpu.vector_store %arg8[%c32, %c0_39], %63 {strides = array<i32>} : memref<72x256xf32, #tpu.memory_space<vmem>>, vector<4x256xf32>,
    %c0_40 = arith.constant 0 : index
    %c0_41 = arith.constant 0 : index
    %65 = vector.load %arg8[%c0_40, %c0_41] : memref<72x256xf32, #tpu.memory_space<vmem>>, vector<36x256xf32>
    %cst_42 = arith.constant dense<0.000000e+00> : vector<12x256xf32>
    %66 = tpu.matmul %24, %65, %cst_42 {dimension_numbers = #tpu.dot_dimension_numbers<[1], [0], [0], [1], [0, 0, 1, 1], [], []>} : vector<12x36xf32>, vector<36x256xf32>, vector<12x256xf32> -> vector<12x256xf32>
    %67 = vector.broadcast %25 : vector<12x1xf32> to vector<12x256xf32>
    %68 = arith.addf %66, %67 : vector<12x256xf32>
    %69 = vector.extract_strided_slice %68 {offsets = [0, 0], sizes = [8, 256], strides = [1, 1]} : vector<12x256xf32> to vector<8x256xf32>
    %70 = vector.extract_strided_slice %68 {offsets = [8, 0], sizes = [4, 256], strides = [1, 1]} : vector<12x256xf32> to vector<4x256xf32>
    %c0_43 = arith.constant 0 : index
    %c0_44 = arith.constant 0 : index
    %71 = vector.load %arg4[%c0_43, %c0_44] : memref<4x72xf32, #tpu.memory_space<vmem>>, vector<4x72xf32>
    %c0_45 = arith.constant 0 : index
    %c0_46 = arith.constant 0 : index
    %72 = vector.load %arg5[%c0_45, %c0_46] : memref<4x1xf32, #tpu.memory_space<vmem>>, vector<4x1xf32>
    %c0_47 = arith.constant 0 : index
    %c128_48 = arith.constant 128 : index
    %73 = vector.load %arg7[%c0_47, %c128_48] : memref<8x512xf32, #tpu.memory_space<vmem>>, vector<8x256xf32>
    tpu.vector_store %arg7[%c0_47, %c128_48], %69 {strides = array<i32>} : memref<8x512xf32, #tpu.memory_space<vmem>>, vector<8x256xf32>,
    %c0_49 = arith.constant 0 : index
    %c111_50 = arith.constant 111 : index
    %74 = vector.load %arg7[%c0_49, %c111_50] : memref<8x512xf32, #tpu.memory_space<vmem>>, vector<8x256xf32>
    %cst_51 = arith.constant 0.000000e+00 : f32
    %75 = vector.broadcast %cst_51 : f32 to vector<8x256xf32>
    %76 = arith.select %18, %74, %75 : vector<8x256xi1>, vector<8x256xf32>
    %c0_52 = arith.constant 0 : index
    %c0_53 = arith.constant 0 : index
    %77 = vector.load %arg8[%c0_52, %c0_53] : memref<72x256xf32, #tpu.memory_space<vmem>>, vector<8x256xf32>
    tpu.vector_store %arg8[%c0_52, %c0_53], %76 {strides = array<i32>} : memref<72x256xf32, #tpu.memory_space<vmem>>, vector<8x256xf32>,
    %c0_54 = arith.constant 0 : index
    %c112_55 = arith.constant 112 : index
    %78 = vector.load %arg7[%c0_54, %c112_55] : memref<8x512xf32, #tpu.memory_space<vmem>>, vector<8x256xf32>
    %c8_56 = arith.constant 8 : index
    %c0_57 = arith.constant 0 : index
    %79 = vector.load %arg8[%c8_56, %c0_57] : memref<72x256xf32, #tpu.memory_space<vmem>>, vector<8x256xf32>
    tpu.vector_store %arg8[%c8_56, %c0_57], %78 {strides = array<i32>} : memref<72x256xf32, #tpu.memory_space<vmem>>, vector<8x256xf32>,
    %c0_58 = arith.constant 0 : index
    %c113_59 = arith.constant 113 : index
    %80 = vector.load %arg7[%c0_58, %c113_59] : memref<8x512xf32, #tpu.memory_space<vmem>>, vector<8x256xf32>
    %cst_60 = arith.constant 0.000000e+00 : f32
    %81 = vector.broadcast %cst_60 : f32 to vector<8x256xf32>
    %82 = arith.select %20, %80, %81 : vector<8x256xi1>, vector<8x256xf32>
    %c16_61 = arith.constant 16 : index
    %c0_62 = arith.constant 0 : index
    %83 = vector.load %arg8[%c16_61, %c0_62] : memref<72x256xf32, #tpu.memory_space<vmem>>, vector<8x256xf32>
    tpu.vector_store %arg8[%c16_61, %c0_62], %82 {strides = array<i32>} : memref<72x256xf32, #tpu.memory_space<vmem>>, vector<8x256xf32>,
    %c0_63 = arith.constant 0 : index
    %c127_64 = arith.constant 127 : index
    %84 = vector.load %arg7[%c0_63, %c127_64] : memref<8x512xf32, #tpu.memory_space<vmem>>, vector<8x256xf32>
    %cst_65 = arith.constant 0.000000e+00 : f32
    %85 = vector.broadcast %cst_65 : f32 to vector<8x256xf32>
    %86 = arith.select %18, %84, %85 : vector<8x256xi1>, vector<8x256xf32>
    %c24_66 = arith.constant 24 : index
    %c0_67 = arith.constant 0 : index
    %87 = vector.load %arg8[%c24_66, %c0_67] : memref<72x256xf32, #tpu.memory_space<vmem>>, vector<8x256xf32>
    tpu.vector_store %arg8[%c24_66, %c0_67], %86 {strides = array<i32>} : memref<72x256xf32, #tpu.memory_space<vmem>>, vector<8x256xf32>,
    %c0_68 = arith.constant 0 : index
    %c128_69 = arith.constant 128 : index
    %88 = vector.load %arg7[%c0_68, %c128_69] : memref<8x512xf32, #tpu.memory_space<vmem>>, vector<8x256xf32>
    %c32_70 = arith.constant 32 : index
    %c0_71 = arith.constant 0 : index
    %89 = vector.load %arg8[%c32_70, %c0_71] : memref<72x256xf32, #tpu.memory_space<vmem>>, vector<8x256xf32>
    tpu.vector_store %arg8[%c32_70, %c0_71], %88 {strides = array<i32>} : memref<72x256xf32, #tpu.memory_space<vmem>>, vector<8x256xf32>,
    %c0_72 = arith.constant 0 : index
    %c129_73 = arith.constant 129 : index
    %90 = vector.load %arg7[%c0_72, %c129_73] : memref<8x512xf32, #tpu.memory_space<vmem>>, vector<8x256xf32>
    %cst_74 = arith.constant 0.000000e+00 : f32
    %91 = vector.broadcast %cst_74 : f32 to vector<8x256xf32>
    %92 = arith.select %20, %90, %91 : vector<8x256xi1>, vector<8x256xf32>
    %c40 = arith.constant 40 : index
    %c0_75 = arith.constant 0 : index
    %93 = vector.load %arg8[%c40, %c0_75] : memref<72x256xf32, #tpu.memory_space<vmem>>, vector<8x256xf32>
    tpu.vector_store %arg8[%c40, %c0_75], %92 {strides = array<i32>} : memref<72x256xf32, #tpu.memory_space<vmem>>, vector<8x256xf32>,
    %c0_76 = arith.constant 0 : index
    %c143_77 = arith.constant 143 : index
    %94 = vector.load %arg7[%c0_76, %c143_77] : memref<8x512xf32, #tpu.memory_space<vmem>>, vector<8x256xf32>
    %cst_78 = arith.constant 0.000000e+00 : f32
    %95 = vector.broadcast %cst_78 : f32 to vector<8x256xf32>
    %96 = arith.select %18, %94, %95 : vector<8x256xi1>, vector<8x256xf32>
    %c48 = arith.constant 48 : index
    %c0_79 = arith.constant 0 : index
    %97 = vector.load %arg8[%c48, %c0_79] : memref<72x256xf32, #tpu.memory_space<vmem>>, vector<8x256xf32>
    tpu.vector_store %arg8[%c48, %c0_79], %96 {strides = array<i32>} : memref<72x256xf32, #tpu.memory_space<vmem>>, vector<8x256xf32>,
    %c0_80 = arith.constant 0 : index
    %c144_81 = arith.constant 144 : index
    %98 = vector.load %arg7[%c0_80, %c144_81] : memref<8x512xf32, #tpu.memory_space<vmem>>, vector<8x256xf32>
    %c56 = arith.constant 56 : index
    %c0_82 = arith.constant 0 : index
    %99 = vector.load %arg8[%c56, %c0_82] : memref<72x256xf32, #tpu.memory_space<vmem>>, vector<8x256xf32>
    tpu.vector_store %arg8[%c56, %c0_82], %98 {strides = array<i32>} : memref<72x256xf32, #tpu.memory_space<vmem>>, vector<8x256xf32>,
    %c0_83 = arith.constant 0 : index
    %c145_84 = arith.constant 145 : index
    %100 = vector.load %arg7[%c0_83, %c145_84] : memref<8x512xf32, #tpu.memory_space<vmem>>, vector<8x256xf32>
    %cst_85 = arith.constant 0.000000e+00 : f32
    %101 = vector.broadcast %cst_85 : f32 to vector<8x256xf32>
    %102 = arith.select %20, %100, %101 : vector<8x256xi1>, vector<8x256xf32>
    %c64 = arith.constant 64 : index
    %c0_86 = arith.constant 0 : index
    %103 = vector.load %arg8[%c64, %c0_86] : memref<72x256xf32, #tpu.memory_space<vmem>>, vector<8x256xf32>
    tpu.vector_store %arg8[%c64, %c0_86], %102 {strides = array<i32>} : memref<72x256xf32, #tpu.memory_space<vmem>>, vector<8x256xf32>,
    %c0_87 = arith.constant 0 : index
    %c0_88 = arith.constant 0 : index
    %104 = vector.load %arg8[%c0_87, %c0_88] : memref<72x256xf32, #tpu.memory_space<vmem>>, vector<72x256xf32>
    %cst_89 = arith.constant dense<0.000000e+00> : vector<4x256xf32>
    %105 = tpu.matmul %71, %104, %cst_89 {dimension_numbers = #tpu.dot_dimension_numbers<[1], [0], [0], [1], [0, 0, 1, 1], [], []>} : vector<4x72xf32>, vector<72x256xf32>, vector<4x256xf32> -> vector<4x256xf32>
    %106 = vector.broadcast %72 : vector<4x1xf32> to vector<4x256xf32>
    %107 = arith.addf %105, %106 : vector<4x256xf32>
    %108 = arith.addf %107, %70 : vector<4x256xf32>
    %cst_90 = arith.constant 0.000000e+00 : f32
    %109 = vector.broadcast %cst_90 : f32 to vector<4x256xf32>
    %110 = arith.maximumf %108, %109 : vector<4x256xf32>
    %c0_91 = arith.constant 0 : index
    %c0_92 = arith.constant 0 : index
    %c0_93 = arith.constant 0 : index
    %111 = vector.load %arg6[%c0_91, %c0_92, %c0_93] : memref<1x4x256xf32, #tpu.memory_space<vmem>>, vector<1x4x256xf32>
    %112 = vector.shape_cast %111 : vector<1x4x256xf32> to vector<4x256xf32>
    %113 = vector.shape_cast %110 : vector<4x256xf32> to vector<1x4x256xf32>
    tpu.vector_store %arg6[%c0_91, %c0_92, %c0_93], %113 {strides = array<i32>} : memref<1x4x256xf32, #tpu.memory_space<vmem>>, vector<1x4x256xf32>,
    return
  }
  func.func @transform_0(%arg0: i32) -> (i32, i32, i32) {
    %c0_i32 = arith.constant 0 : i32
    %c0_i32_0 = arith.constant 0 : i32
    %c0_i32_1 = arith.constant 0 : i32
    return %arg0, %c0_i32, %c0_i32_0 : i32, i32, i32
  }
  func.func @transform_1(%arg0: i32) -> (i32, i32) {
    %c0_i32 = arith.constant 0 : i32
    %c0_i32_0 = arith.constant 0 : i32
    %c0_i32_1 = arith.constant 0 : i32
    return %c0_i32, %c0_i32_0 : i32, i32
  }
  func.func @transform_2(%arg0: i32) -> (i32, i32) {
    %c0_i32 = arith.constant 0 : i32
    %c0_i32_0 = arith.constant 0 : i32
    %c0_i32_1 = arith.constant 0 : i32
    return %c0_i32, %c0_i32_0 : i32, i32
  }
  func.func @transform_3(%arg0: i32) -> (i32, i32) {
    %c0_i32 = arith.constant 0 : i32
    %c0_i32_0 = arith.constant 0 : i32
    %c0_i32_1 = arith.constant 0 : i32
    return %c0_i32, %c0_i32_0 : i32, i32
  }
  func.func @transform_4(%arg0: i32) -> (i32, i32) {
    %c0_i32 = arith.constant 0 : i32
    %c0_i32_0 = arith.constant 0 : i32
    %c0_i32_1 = arith.constant 0 : i32
    return %c0_i32, %c0_i32_0 : i32, i32
  }
  func.func @transform_5(%arg0: i32) -> (i32, i32, i32) {
    %c0_i32 = arith.constant 0 : i32
    %c0_i32_0 = arith.constant 0 : i32
    %c0_i32_1 = arith.constant 0 : i32
    return %arg0, %c0_i32, %c0_i32_0 : i32, i32, i32
  }
}

</mosaic_0001>

<llo_original>
// kernel: residual_forward.1
$region0: #{residual_forward.1}
  #allocation0 [shape = 'u32[]', space=smem, size = 0x4, offset = 0x4, fixed_abs, tag = 'smem constant byte address 0x4 - core index']
  #allocation1 [shape = 'u32[72,128]{1,0:T(1,128)}', space=vmem, size = 0x9000, scoped, tag = 'internal scratch']
  #allocation2 [shape = 'f32[8,512]{1,0:T(8,128)}', space=vmem, size = 0x4000, scoped, tag = 'scratch operand']
  #allocation3 [shape = 'f32[72,256]{1,0:T(8,128)}', space=vmem, size = 0x12000, scoped, tag = 'scratch operand']
  %s0 = inlined_call_operand.vmem [shape: f32[2,4,256], index: 0, kind: input, shape index: {}]
  %s1 = inlined_call_operand.vmem [shape: f32[12,36], index: 1, kind: input, shape index: {}]
  %s2 = inlined_call_operand.vmem [shape: f32[12,1], index: 2, kind: input, shape index: {}]
  %s3 = inlined_call_operand.vmem [shape: f32[4,72], index: 3, kind: input, shape index: {}]
  %s4 = inlined_call_operand.vmem [shape: f32[4,1], index: 4, kind: input, shape index: {}]
  %s5 = inlined_call_operand.vmem [shape: f32[2,4,256], index: 5, kind: output, shape index: {}]
  %s6 = sld [smem:[#allocation0]]
  $region53: #{residual_forward.1} parent=0
    _
  %s8 = ssub.s32 1, %s6
  %s9 = scalar_select 0, %s8, %s6
  loop: start=0, step=1, limit=4
  $region2: #{residual_forward.1} parent=0 // loop_pre_header
    _
  $region3: #{residual_forward.1} parent=0 // loop_header
    %s11 = sphi 0, %s15
    %p12 = scmp.ge.s32.totalorder %s11, 4
    %s21 = sphi 0, %s23
    %s24 = sphi 0, %s21
    %s25 = sphi 0, %s24
    %s41 = sphi 0, %s25
    %s45 = sphi 0, %s45
    %s47 = sphi 0, %s45
    %s48 = sphi 0, %s47
    %s62 = sphi 0, %s48
    %s66 = sphi 0, %s66
    %s68 = sphi 0, %s66
    %s69 = sphi 0, %s68
    %s83 = sphi 0, %s69
    %s87 = sphi 0, %s87
    %s89 = sphi 0, %s87
    %s90 = sphi 0, %s89
    %s104 = sphi 0, %s90
    %s108 = sphi 0, %s108
    %s110 = sphi 0, %s108
    %s111 = sphi 0, %s110
    %s125 = sphi 0, %s111
    %s131 = sphi 0, %s133
    %s134 = sphi 0, %s131
    %s135 = sphi 0, %s134
    %s151 = sphi 0, %s135
  $region4: #{residual_forward.1} parent=0 // loop_header_branch
    %14 = sbr.rel (%p12) target = $region8
  $region5: #{residual_forward.1} parent=0 // loop_body
    %s16 = ssub.s32 %s11, 1
    %s17 = ssub.s32 %s11, 2
    %s18 = sadd.s32 %s11, 1
    %s19 = ssub.s32 %s11, %s18
    %p20 = scmp.eq.s32.totalorder %s19, 0
    %s22 = sadd.s32 %s21, 1
    %s23 = scalar_select %p20, %s21, %s22
    %p26 = pneg %p20
    %p27 = scmp.eq.s32.totalorder %s11, 1
    %p28 = por %p26, %p27
    %p29 = scmp.ne.s32.totalorder %s21, %s24
    %p30 = scmp.eq.s32.totalorder %s11, 0
    %p31 = por %p29, %p30
    %p32 = scmp.ne.s32.totalorder %s21, %s24
    %p33 = scmp.eq.s32.totalorder %s16, 1
    %p34 = por %p32, %p33
    %p35 = scmp.ne.s32.totalorder %s24, %s25
    %p36 = scmp.eq.s32.totalorder %s16, 0
    %p37 = por %p35, %p36
    %p38 = scmp.ne.s32.totalorder %s24, %s25
    %p39 = scmp.eq.s32.totalorder %s17, 1
    %p40 = por %p38, %p39
    %p42 = scmp.ne.s32.totalorder %s25, %s41
    %p43 = scmp.eq.s32.totalorder %s17, 0
    %p44 = por %p42, %p43
    %s46 = sadd.s32 %s45, 1
    %p49 = scmp.eq.s32.totalorder %s11, 1
    %p50 = scmp.ne.s32.totalorder %s45, %s47
    %p51 = scmp.eq.s32.totalorder %s11, 0
    %p52 = por %p50, %p51
    %p53 = scmp.ne.s32.totalorder %s45, %s47
    %p54 = scmp.eq.s32.totalorder %s16, 1
    %p55 = por %p53, %p54
    %p56 = scmp.ne.s32.totalorder %s47, %s48
    %p57 = scmp.eq.s32.totalorder %s16, 0
    %p58 = por %p56, %p57
    %p59 = scmp.ne.s32.totalorder %s47, %s48
    %p60 = scmp.eq.s32.totalorder %s17, 1
    %p61 = por %p59, %p60
    %p63 = scmp.ne.s32.totalorder %s48, %s62
    %p64 = scmp.eq.s32.totalorder %s17, 0
    %p65 = por %p63, %p64
    %s67 = sadd.s32 %s66, 1
    %p70 = scmp.eq.s32.totalorder %s11, 1
    %p71 = scmp.ne.s32.totalorder %s66, %s68
    %p72 = scmp.eq.s32.totalorder %s11, 0
    %p73 = por %p71, %p72
    %p74 = scmp.ne.s32.totalorder %s66, %s68
    %p75 = scmp.eq.s32.totalorder %s16, 1
    %p76 = por %p74, %p75
    %p77 = scmp.ne.s32.totalorder %s68, %s69
    %p78 = scmp.eq.s32.totalorder %s16, 0
    %p79 = por %p77, %p78
    %p80 = scmp.ne.s32.totalorder %s68, %s69
    %p81 = scmp.eq.s32.totalorder %s17, 1
    %p82 = por %p80, %p81
    %p84 = scmp.ne.s32.totalorder %s69, %s83
    %p85 = scmp.eq.s32.totalorder %s17, 0
    %p86 = por %p84, %p85
    %s88 = sadd.s32 %s87, 1
    %p91 = scmp.eq.s32.totalorder %s11, 1
    %p92 = scmp.ne.s32.totalorder %s87, %s89
    %p93 = scmp.eq.s32.totalorder %s11, 0
    %p94 = por %p92, %p93
    %p95 = scmp.ne.s32.totalorder %s87, %s89
    %p96 = scmp.eq.s32.totalorder %s16, 1
    %p97 = por %p95, %p96
    %p98 = scmp.ne.s32.totalorder %s89, %s90
    %p99 = scmp.eq.s32.totalorder %s16, 0
    %p100 = por %p98, %p99
    %p101 = scmp.ne.s32.totalorder %s89, %s90
    %p102 = scmp.eq.s32.totalorder %s17, 1
    %p103 = por %p101, %p102
    %p105 = scmp.ne.s32.totalorder %s90, %s104
    %p106 = scmp.eq.s32.totalorder %s17, 0
    %p107 = por %p105, %p106
    %s109 = sadd.s32 %s108, 1
    %p112 = scmp.eq.s32.totalorder %s11, 1
    %p113 = scmp.ne.s32.totalorder %s108, %s110
    %p114 = scmp.eq.s32.totalorder %s11, 0
    %p115 = por %p113, %p114
    %p116 = scmp.ne.s32.totalorder %s108, %s110
    %p117 = scmp.eq.s32.totalorder %s16, 1
    %p118 = por %p116, %p117
    %p119 = scmp.ne.s32.totalorder %s110, %s111
    %p120 = scmp.eq.s32.totalorder %s16, 0
    %p121 = por %p119, %p120
    %p122 = scmp.ne.s32.totalorder %s110, %s111
    %p123 = scmp.eq.s32.totalorder %s17, 1
    %p124 = por %p122, %p123
    %p126 = scmp.ne.s32.totalorder %s111, %s125
    %p127 = scmp.eq.s32.totalorder %s17, 0
    %p128 = por %p126, %p127
    %s129 = ssub.s32 %s11, %s18
    %p130 = scmp.eq.s32.totalorder %s129, 0
    %s132 = sadd.s32 %s131, 1
    %s133 = scalar_select %p130, %s131, %s132
    %p136 = pneg %p130
    %p137 = scmp.eq.s32.totalorder %s11, 1
    %p138 = por %p136, %p137
    %p139 = scmp.ne.s32.totalorder %s131, %s134
    %p140 = scmp.eq.s32.totalorder %s11, 0
    %p141 = por %p139, %p140
    %p142 = scmp.ne.s32.totalorder %s131, %s134
    %p143 = scmp.eq.s32.totalorder %s16, 1
    %p144 = por %p142, %p143
    %p145 = scmp.ne.s32.totalorder %s134, %s135
    %p146 = scmp.eq.s32.totalorder %s16, 0
    %p147 = por %p145, %p146
    %p148 = scmp.ne.s32.totalorder %s134, %s135
    %p149 = scmp.eq.s32.totalorder %s17, 1
    %p150 = por %p148, %p149
    %p152 = scmp.ne.s32.totalorder %s135, %s151
    %p153 = scmp.eq.s32.totalorder %s17, 0
    %p154 = por %p152, %p153
    %p155 = scmp.le.s32.totalorder 1, %s11
    %p156 = scmp.lt.s32.totalorder %s11, 3
    %p157 = pnand %p155, %p156
    %p158 = pneg %p157
    // Predicated region
    $region9: #{residual_forward.1} parent=5 // pred_check
      _
    $region10: #{residual_forward.1} parent=5 // pred_check_branch
      %160 = sbr.rel (%p157) target = $region12
    $region11: #{residual_forward.1} parent=5 // pred_region
      %s161 = ssub.s32 %s11, 1
      // Predicated region
      $region13: #{residual_forward.1} parent=11 // pred_check
        %p162 = pneg %p58
      $region14: #{residual_forward.1} parent=11 // pred_check_branch
        %164 = sbr.rel (%p162) target = $region16
      $region15: #{residual_forward.1} parent=11 // pred_region
        _
      $region16: #{residual_forward.1} parent=11 // pred_fallthru
        _
      // Predicated region
      $region17: #{residual_forward.1} parent=11 // pred_check
        %p165 = pneg %p79
      $region18: #{residual_forward.1} parent=11 // pred_check_branch
        %167 = sbr.rel (%p165) target = $region20
      $region19: #{residual_forward.1} parent=11 // pred_region
        _
      $region20: #{residual_forward.1} parent=11 // pred_fallthru
        _
      // Predicated region
      $region21: #{residual_forward.1} parent=11 // pred_check
        %p168 = pneg %p100
      $region22: #{residual_forward.1} parent=11 // pred_check_branch
        %170 = sbr.rel (%p168) target = $region24
      $region23: #{residual_forward.1} parent=11 // pred_region
        _
      $region24: #{residual_forward.1} parent=11 // pred_fallthru
        _
      // Predicated region
      $region25: #{residual_forward.1} parent=11 // pred_check
        %p171 = pneg %p121
      $region26: #{residual_forward.1} parent=11 // pred_check_branch
        %173 = sbr.rel (%p171) target = $region28
      $region27: #{residual_forward.1} parent=11 // pred_region
        _
      $region28: #{residual_forward.1} parent=11 // pred_fallthru
        _
    $region12: #{residual_forward.1} parent=5 // pred_fallthru
      _
    %p174 = scmp.lt.s32.totalorder %s11, 2
    // Predicated region
    $region29: #{residual_forward.1} parent=5 // pred_check
      %p175 = pneg %p174
    $region30: #{residual_forward.1} parent=5 // pred_check_branch
      %177 = sbr.rel (%p175) target = $region32
    $region31: #{residual_forward.1} parent=5 // pred_region
      // Predicated region
      $region33: #{residual_forward.1} parent=31 // pred_check
        %p178 = pneg %p31
      $region34: #{residual_forward.1} parent=31 // pred_check_branch
        %180 = sbr.rel (%p178) target = $region36
      $region35: #{residual_forward.1} parent=31 // pred_region
        %p181 = scmp.lt.s32.totalorder %s11, 1
        %s182 = scalar_select %p181, %s11, 1
        %s183 = smul.addr %s182, 2
        %s184 = smul.addr %s183, 4
        %s185 = scalar_lea.vmem %s0, %s184
      $region36: #{residual_forward.1} parent=31 // pred_fallthru
        _
    $region32: #{residual_forward.1} parent=5 // pred_fallthru
      _
    %p186 = scmp.le.s32.totalorder 1, %s11
    %p187 = scmp.lt.s32.totalorder %s11, 3
    %p188 = pnand %p186, %p187
    %p189 = pneg %p188
    // Predicated region
    $region37: #{residual_forward.1} parent=5 // pred_check
      _
    $region38: #{residual_forward.1} parent=5 // pred_check_branch
      %191 = sbr.rel (%p188) target = $region40
    $region39: #{residual_forward.1} parent=5 // pred_region
      %s192 = ssub.s32 %s11, 1
      %p193 = scmp.lt.s32.totalorder %s16, 1
      %s194 = scalar_select %p193, %s16, 1
      %s195 = smul.addr %s194, 2
      %s196 = smul.addr %s195, 4
      %s197 = scalar_lea.vmem %s0, %s196
      %p198 = pneg %p37
      %p199 = pneg %p34
      %p200 = pneg %p58
      %p201 = pneg %p55
      %p202 = pneg %p79
      %p203 = pneg %p76
      %p204 = pneg %p100
      %p205 = pneg %p97
      %p206 = pneg %p121
      %p207 = pneg %p118
      %p208 = pneg %p147
      %p209 = pneg %p144
      %p210 = scmp.lt.s32.totalorder %s16, 1
      %s211 = scalar_select %p210, %s16, 1
      %s212 = smul.addr %s211, 2
      %s213 = smul.addr %s212, 4
      %s214 = scalar_lea.vmem %s5, %s213
      %p215 = scmp.lt.s32.totalorder %s16, 1
      %s216 = scalar_select %p215, %s16, 1
      %s217 = smul.addr %s216, 2
      %s218 = smul.addr %s217, 4
      %s219 = scalar_lea.vmem %s0, %s218
      %p220 = scmp.lt.s32.totalorder %s16, 1
      %s221 = scalar_select %p220, %s16, 1
      %s222 = smul.addr %s221, 2
      %s223 = smul.addr %s222, 4
      %s224 = scalar_lea.vmem %s5, %s223
      %v225 = vlaneseq
      %v226 = vand.u32 %v225, 127
      %v227 = vadd.s32 %v226, 128
      %vm228 = vcmp.lt.s32.totalorder %v226, 0
      %v229 = vsub.s32 0, %v226
      %v230 = vsel %vm228, %v229, %v226
      %v231 = vshrl.u32 %v230, 4
      %v232 = vand.u32 %v230, 15
      %v233 = vsub.s32 0, %v232
      %v234 = vsel %vm228, %v233, %v232
      %vm235 = vcmp.lt.s32.totalorder %v227, 0
      %v236 = vsub.s32 0, %v227
      %v237 = vsel %vm235, %v236, %v227
      %v238 = vshrl.u32 %v237, 4
      %v239 = vand.u32 %v237, 15
      %v240 = vsub.s32 0, %v239
      %v241 = vsel %vm235, %v240, %v239
      %vm242 = vcmp.ne.s32.totalorder %v234, 0
      %vm243 = vcmp.ne.s32.totalorder %v241, 0
      %vm244 = vcmp.lt.s32.totalorder %v234, 0
      %vm245 = vcmp.lt.s32.totalorder %v241, 0
      %vm246 = vmand %vm244, %vm242
      %vm247 = vmand %vm245, %vm243
      %v248 = vadd.s32 %v234, 16
      %v249 = vadd.s32 %v241, 16
      %v250 = vsel %vm246, %v248, %v234
      %v251 = vsel %vm247, %v249, %v241
      %vm252 = vcmp.ge.s32.totalorder %v250, 1
      %vm253 = vcmp.ge.s32.totalorder %v251, 1
      %vm254 = vcmp.lt.s32.totalorder %v250, 15
      %vm255 = vcmp.lt.s32.totalorder %v251, 15
      %256 = vst [vmem:[#allocation2] sm:$0xff] 0.0
      %257 = vst [vmem:[#allocation2 + $0x18] sm:$0xff] 0.0
      %v258 = vld [vmem:[%s1] sm:$0xff]
      %v259 = vld [vmem:[%s1 + $0x8] sm:$0xf]
      %v260 = vld [vmem:[%s2] sm:$0xff]
      %v261 = vld [vmem:[%s2 + $0x8] sm:$0xf]
      %v262 = vld [vmem:[%s219] sm:$0xff]
      %264 = vst [vmem:[#allocation1] ss:$2 sm:$0xff] %v262
      %v265 = vld.sshfl [vmem:[#allocation1] sm:$0xff pattern:$0x75316420]
      %v266 = vld.sshfl [vmem:[#allocation1 + $0x8] sm:$0xff pattern:$0x75316420]
      %269 = vst [vmem:[#allocation2 + $0x8] sm:$0xf] %v265
      %270 = vst [vmem:[#allocation2 + $0x10] sm:$0xf] %v266
      %v271 = vld [vmem:[#allocation2] sm:$0xf]
      %v272 = vld [vmem:[#allocation2 + $0x8] sm:$0xf]
      %v273 = vld [vmem:[#allocation2 + $0x10] sm:$0xf]
      %277 = vrot.lane.b32.xlu0 %v271, 17
      %v278 = vpop.permute.xlu0 %277
      %279 = vrot.lane.b32.xlu0 %v272, 17
      %v280 = vpop.permute.xlu0 %279
      %281 = vrot.lane.b32.xlu0 %v273, 17
      %v282 = vpop.permute.xlu0 %281
      %vm283 = vcmask 138240
      %v284 = vsel %vm283, %v278, %v280
      %v285 = vsel %vm283, %v280, %v282
      %v288 = vsel %vm252, %v284, 0.0
      %v289 = vsel %vm253, %v285, 0.0
      %290 = vst [vmem:[#allocation3] sm:$0xf] %v288
      %291 = vst [vmem:[#allocation3 + $0x8] sm:$0xf] %v289
      %v292 = vld [vmem:[#allocation2] sm:$0xf]
      %v293 = vld [vmem:[#allocation2 + $0x8] sm:$0xf]
      %v294 = vld [vmem:[#allocation2 + $0x10] sm:$0xf]
      %v298 = vrot.slane %v292, 4
      %v299 = vrot.slane %v293, 4
      %v300 = vrot.slane %v294, 4
      %301 = vrot.lane.b32.xlu0 %v298, 16
      %v302 = vpop.permute.xlu0 %301
      %303 = vrot.lane.b32.xlu0 %v299, 16
      %v304 = vpop.permute.xlu0 %303
      %305 = vrot.lane.b32.xlu0 %v300, 16
      %v306 = vpop.permute.xlu0 %305
      %vm307 = vcmask 130048
      %v308 = vsel %vm307, %v302, %v304
      %v309 = vsel %vm307, %v304, %v306
      %312 = vst [vmem:[#allocation3] sm:$0xf0] %v308
      %313 = vst [vmem:[#allocation3 + $0x8] sm:$0xf0] %v309
      %v314 = vld [vmem:[#allocation2] sm:$0xf]
      %v315 = vld [vmem:[#allocation2 + $0x8] sm:$0xf]
      %v316 = vld [vmem:[#allocation2 + $0x10] sm:$0xf]
      %320 = vrot.lane.b32.xlu0 %v314, 15
      %v321 = vpop.permute.xlu0 %320
      %322 = vrot.lane.b32.xlu0 %v315, 15
      %v323 = vpop.permute.xlu0 %322
      %324 = vrot.lane.b32.xlu0 %v316, 15
      %v325 = vpop.permute.xlu0 %324
      %vm326 = vcmask 121856
      %v327 = vsel %vm326, %v321, %v323
      %v328 = vsel %vm326, %v323, %v325
      %v331 = vsel %vm254, %v327, 0.0
      %v332 = vsel %vm255, %v328, 0.0
      %333 = vst [vmem:[#allocation3 + $0x10] sm:$0xf] %v331
      %334 = vst [vmem:[#allocation3 + $0x18] sm:$0xf] %v332
      %v335 = vld [vmem:[#allocation2] sm:$0xf]
      %v336 = vld [vmem:[#allocation2 + $0x8] sm:$0xf]
      %v337 = vld [vmem:[#allocation2 + $0x10] sm:$0xf]
      %341 = vrot.lane.b32.xlu0 %v335, 1
      %v342 = vpop.permute.xlu0 %341
      %343 = vrot.lane.b32.xlu0 %v336, 1
      %v344 = vpop.permute.xlu0 %343
      %345 = vrot.lane.b32.xlu0 %v337, 1
      %v346 = vpop.permute.xlu0 %345
      %vm347 = vcmask 7168
      %v348 = vsel %vm347, %v342, %v344
      %v349 = vsel %vm347, %v344, %v346
      %v352 = vsel %vm252, %v348, 0.0
      %v353 = vsel %vm253, %v349, 0.0
      %v356 = vrot.slane %v352, 4
      %v357 = vrot.slane %v353, 4
      %360 = vst [vmem:[#allocation3 + $0x10] sm:$0xf0] %v356
      %361 = vst [vmem:[#allocation3 + $0x18] sm:$0xf0] %v357
      %v362 = vld [vmem:[#allocation2 + $0x8] sm:$0xf]
      %v363 = vld [vmem:[#allocation2 + $0x10] sm:$0xf]
      %364 = vst [vmem:[#allocation3 + $0x20] sm:$0xf] %v362
      %365 = vst [vmem:[#allocation3 + $0x28] sm:$0xf] %v363
      %v366 = vld [vmem:[#allocation2 + $0x8] sm:$0xf]
      %v367 = vld [vmem:[#allocation2 + $0x10] sm:$0xf]
      %v368 = vld [vmem:[#allocation2 + $0x18] sm:$0xf]
      %372 = vrot.lane.b32.xlu0 %v366, 127
      %v373 = vpop.permute.xlu0 %372
      %374 = vrot.lane.b32.xlu0 %v367, 127
      %v375 = vpop.permute.xlu0 %374
      %376 = vrot.lane.b32.xlu0 %v368, 127
      %v377 = vpop.permute.xlu0 %376
      %vm378 = vcmask 1039360
      %v379 = vsel %vm378, %v373, %v375
      %v380 = vsel %vm378, %v375, %v377
      %v383 = vsel %vm254, %v379, 0.0
      %v384 = vsel %vm255, %v380, 0.0
      %v387 = vrot.slane %v383, 4
      %v388 = vrot.slane %v384, 4
      %391 = vst [vmem:[#allocation3 + $0x20] sm:$0xf0] %v387
      %392 = vst [vmem:[#allocation3 + $0x28] sm:$0xf0] %v388
      %v393 = vld [vmem:[#allocation2 + $0x8] sm:$0xf]
      %v394 = vld [vmem:[#allocation2 + $0x10] sm:$0xf]
      %v395 = vld [vmem:[#allocation2 + $0x18] sm:$0xf]
      %399 = vrot.lane.b32.xlu0 %v393, 113
      %v400 = vpop.permute.xlu0 %399
      %401 = vrot.lane.b32.xlu0 %v394, 113
      %v402 = vpop.permute.xlu0 %401
      %403 = vrot.lane.b32.xlu0 %v395, 113
      %v404 = vpop.permute.xlu0 %403
      %vm405 = vcmask 924672
      %v406 = vsel %vm405, %v400, %v402
      %v407 = vsel %vm405, %v402, %v404
      %v410 = vsel %vm252, %v406, 0.0
      %v411 = vsel %vm253, %v407, 0.0
      %412 = vst [vmem:[#allocation3 + $0x30] sm:$0xf] %v410
      %413 = vst [vmem:[#allocation3 + $0x38] sm:$0xf] %v411
      %v414 = vld [vmem:[#allocation2 + $0x8] sm:$0xf]
      %v415 = vld [vmem:[#allocation2 + $0x10] sm:$0xf]
      %v416 = vld [vmem:[#allocation2 + $0x18] sm:$0xf]
      %v420 = vrot.slane %v414, 4
      %v421 = vrot.slane %v415, 4
      %v422 = vrot.slane %v416, 4
      %423 = vrot.lane.b32.xlu0 %v420, 112
      %v424 = vpop.permute.xlu0 %423
      %425 = vrot.lane.b32.xlu0 %v421, 112
      %v426 = vpop.permute.xlu0 %425
      %427 = vrot.lane.b32.xlu0 %v422, 112
      %v428 = vpop.permute.xlu0 %427
      %vm429 = vcmask 916480
      %v430 = vsel %vm429, %v424, %v426
      %v431 = vsel %vm429, %v426, %v428
      %434 = vst [vmem:[#allocation3 + $0x30] sm:$0xf0] %v430
      %435 = vst [vmem:[#allocation3 + $0x38] sm:$0xf0] %v431
      %v436 = vld [vmem:[#allocation2 + $0x8] sm:$0xf]
      %v437 = vld [vmem:[#allocation2 + $0x10] sm:$0xf]
      %v438 = vld [vmem:[#allocation2 + $0x18] sm:$0xf]
      %442 = vrot.lane.b32.xlu0 %v436, 111
      %v443 = vpop.permute.xlu0 %442
      %444 = vrot.lane.b32.xlu0 %v437, 111
      %v445 = vpop.permute.xlu0 %444
      %446 = vrot.lane.b32.xlu0 %v438, 111
      %v447 = vpop.permute.xlu0 %446
      %vm448 = vcmask 908288
      %v449 = vsel %vm448, %v443, %v445
      %v450 = vsel %vm448, %v445, %v447
      %v453 = vsel %vm254, %v449, 0.0
      %v454 = vsel %vm255, %v450, 0.0
      %455 = vst [vmem:[#allocation3 + $0x40] sm:$0xf] %v453
      %456 = vst [vmem:[#allocation3 + $0x48] sm:$0xf] %v454
      %v457 = vld [vmem:[#allocation3] sm:$0xff]
      %v458 = vld [vmem:[#allocation3 + $0x8] sm:$0xff]
      %v459 = vld [vmem:[#allocation3 + $0x10] sm:$0xff]
      %v460 = vld [vmem:[#allocation3 + $0x18] sm:$0xff]
      %v461 = vld [vmem:[#allocation3 + $0x20] sm:$0xff]
      %v462 = vld [vmem:[#allocation3 + $0x28] sm:$0xff]
      %v463 = vld [vmem:[#allocation3 + $0x30] sm:$0xff]
      %v464 = vld [vmem:[#allocation3 + $0x38] sm:$0xff]
      %v465 = vld [vmem:[#allocation3 + $0x40] sm:$0xf]
      %v466 = vld [vmem:[#allocation3 + $0x48] sm:$0xf]
      %468 = vset.pattern.permute.xlu0 0
      %469 = vperm.xlu0 %468, %v260
      %v470 = vpop.permute.xlu0 %469
      %473 = vset.pattern.permute.xlu0 0
      %474 = vperm.xlu0 %473, %v261
      %v475 = vpop.permute.xlu0 %474
      %vm477 = vcmask 293888
      %v479 = vsel %vm477, %v258, 0
      %v482 = vsel %vm477, %v259, 0
      %vm484 = vcmask 1043456
      %v486 = vsel %vm484, %v465, 0
      %v489 = vsel %vm484, %v466, 0
      %491 = vmatpush.msra.mxu0 0.0
      %492 = vmatpush.msra.mxu0 0.0
      %493 = vmatpush.msra.mxu0 0.0
      %494 = vmatpush.msra.mxu0 0.0
      %495 = vmatpush.msra.mxu0 0.0
      %496 = vmatpush.msra.mxu0 0.0
      %497 = vmatpush.msra.mxu0 0.0
      %498 = vmatpush.msra.mxu0 0.0
      %499 = vmatpush.msra.mxu0 0.0
      %500 = vmatpush.msra.mxu0 0.0
      %501 = vmatpush.msra.mxu0 0.0
      %502 = vmatpush.msra.mxu0 %v486
      %503 = vmatpush.msra.mxu0 %v463
      %504 = vmatpush.msra.mxu0 %v461
      %505 = vmatpush.msra.mxu0 %v459
      %506 = vmatpush.msra.mxu0 %v457
      %507 = vmatmul.f32.gmra.mxu0 %v479
      %v508 = vpop.f32.mrf.mxu0
      %v509 = vadd.f32 %v470, %v508
      %510 = vmatmul.f32.gmra.mxu0 %v482
      %v511 = vpop.f32.mrf.mxu0
      %v512 = vadd.f32 %v475, %v511
      %513 = vdwg.mxu0
      %514 = vmatpush.msra.mxu0 0.0
      %515 = vmatpush.msra.mxu0 0.0
      %516 = vmatpush.msra.mxu0 0.0
      %517 = vmatpush.msra.mxu0 0.0
      %518 = vmatpush.msra.mxu0 0.0
      %519 = vmatpush.msra.mxu0 0.0
      %520 = vmatpush.msra.mxu0 0.0
      %521 = vmatpush.msra.mxu0 0.0
      %522 = vmatpush.msra.mxu0 0.0
      %523 = vmatpush.msra.mxu0 0.0
      %524 = vmatpush.msra.mxu0 0.0
      %525 = vmatpush.msra.mxu0 %v489
      %526 = vmatpush.msra.mxu0 %v464
      %527 = vmatpush.msra.mxu0 %v462
      %528 = vmatpush.msra.mxu0 %v460
      %529 = vmatpush.msra.mxu0 %v458
      %530 = vmatmul.f32.gmra.mxu0 %v479
      %v531 = vpop.f32.mrf.mxu0
      %v532 = vadd.f32 %v470, %v531
      %533 = vmatmul.f32.gmra.mxu0 %v482
      %v534 = vpop.f32.mrf.mxu0
      %v535 = vadd.f32 %v475, %v534
      %536 = vdwg.mxu0
      %v537 = vld [vmem:[%s3] sm:$0xf]
      %v538 = vld [vmem:[%s4] sm:$0xf]
      %539 = vst [vmem:[#allocation2 + $0x8] sm:$0xff] %v509
      %540 = vst [vmem:[#allocation2 + $0x10] sm:$0xff] %v532
      %v541 = vld [vmem:[#allocation2] sm:$0xff]
      %v542 = vld [vmem:[#allocation2 + $0x8] sm:$0xff]
      %v543 = vld [vmem:[#allocation2 + $0x10] sm:$0xff]
      %547 = vrot.lane.b32.xlu0 %v541, 17
      %v548 = vpop.permute.xlu0 %547
      %549 = vrot.lane.b32.xlu0 %v542, 17
      %v550 = vpop.permute.xlu0 %549
      %551 = vrot.lane.b32.xlu0 %v543, 17
      %v552 = vpop.permute.xlu0 %551
      %v553 = vsel %vm283, %v548, %v550
      %v554 = vsel %vm283, %v550, %v552
      %v557 = vsel %vm252, %v553, 0.0
      %v558 = vsel %vm253, %v554, 0.0
      %559 = vst [vmem:[#allocation3] sm:$0xff] %v557
      %560 = vst [vmem:[#allocation3 + $0x8] sm:$0xff] %v558
      %v561 = vld [vmem:[#allocation2] sm:$0xff]
      %v562 = vld [vmem:[#allocation2 + $0x8] sm:$0xff]
      %v563 = vld [vmem:[#allocation2 + $0x10] sm:$0xff]
      %567 = vrot.lane.b32.xlu0 %v561, 16
      %v568 = vpop.permute.xlu0 %567
      %569 = vrot.lane.b32.xlu0 %v562, 16
      %v570 = vpop.permute.xlu0 %569
      %571 = vrot.lane.b32.xlu0 %v563, 16
      %v572 = vpop.permute.xlu0 %571
      %v573 = vsel %vm307, %v568, %v570
      %v574 = vsel %vm307, %v570, %v572
      %577 = vst [vmem:[#allocation3 + $0x10] sm:$0xff] %v573
      %578 = vst [vmem:[#allocation3 + $0x18] sm:$0xff] %v574
      %v579 = vld [vmem:[#allocation2] sm:$0xff]
      %v580 = vld [vmem:[#allocation2 + $0x8] sm:$0xff]
      %v581 = vld [vmem:[#allocation2 + $0x10] sm:$0xff]
      %585 = vrot.lane.b32.xlu0 %v579, 15
      %v586 = vpop.permute.xlu0 %585
      %587 = vrot.lane.b32.xlu0 %v580, 15
      %v588 = vpop.permute.xlu0 %587
      %589 = vrot.lane.b32.xlu0 %v581, 15
      %v590 = vpop.permute.xlu0 %589
      %v591 = vsel %vm326, %v586, %v588
      %v592 = vsel %vm326, %v588, %v590
      %v595 = vsel %vm254, %v591, 0.0
      %v596 = vsel %vm255, %v592, 0.0
      %597 = vst [vmem:[#allocation3 + $0x20] sm:$0xff] %v595
      %598 = vst [vmem:[#allocation3 + $0x28] sm:$0xff] %v596
      %v599 = vld [vmem:[#allocation2] sm:$0xff]
      %v600 = vld [vmem:[#allocation2 + $0x8] sm:$0xff]
      %v601 = vld [vmem:[#allocation2 + $0x10] sm:$0xff]
      %605 = vrot.lane.b32.xlu0 %v599, 1
      %v606 = vpop.permute.xlu0 %605
      %607 = vrot.lane.b32.xlu0 %v600, 1
      %v608 = vpop.permute.xlu0 %607
      %609 = vrot.lane.b32.xlu0 %v601, 1
      %v610 = vpop.permute.xlu0 %609
      %v611 = vsel %vm347, %v606, %v608
      %v612 = vsel %vm347, %v608, %v610
      %v615 = vsel %vm252, %v611, 0.0
      %v616 = vsel %vm253, %v612, 0.0
      %617 = vst [vmem:[#allocation3 + $0x30] sm:$0xff] %v615
      %618 = vst [vmem:[#allocation3 + $0x38] sm:$0xff] %v616
      %v619 = vld [vmem:[#allocation2 + $0x8] sm:$0xff]
      %v620 = vld [vmem:[#allocation2 + $0x10] sm:$0xff]
      %621 = vst [vmem:[#allocation3 + $0x40] sm:$0xff] %v619
      %622 = vst [vmem:[#allocation3 + $0x48] sm:$0xff] %v620
      %v623 = vld [vmem:[#allocation2 + $0x8] sm:$0xff]
      %v624 = vld [vmem:[#allocation2 + $0x10] sm:$0xff]
      %v625 = vld [vmem:[#allocation2 + $0x18] sm:$0xff]
      %629 = vrot.lane.b32.xlu0 %v623, 127
      %v630 = vpop.permute.xlu0 %629
      %631 = vrot.lane.b32.xlu0 %v624, 127
      %v632 = vpop.permute.xlu0 %631
      %633 = vrot.lane.b32.xlu0 %v625, 127
      %v634 = vpop.permute.xlu0 %633
      %v635 = vsel %vm378, %v630, %v632
      %v636 = vsel %vm378, %v632, %v634
      %v639 = vsel %vm254, %v635, 0.0
      %v640 = vsel %vm255, %v636, 0.0
      %641 = vst [vmem:[#allocation3 + $0x50] sm:$0xff] %v639
      %642 = vst [vmem:[#allocation3 + $0x58] sm:$0xff] %v640
      %v643 = vld [vmem:[#allocation2 + $0x8] sm:$0xff]
      %v644 = vld [vmem:[#allocation2 + $0x10] sm:$0xff]
      %v645 = vld [vmem:[#allocation2 + $0x18] sm:$0xff]
      %649 = vrot.lane.b32.xlu0 %v643, 113
      %v650 = vpop.permute.xlu0 %649
      %651 = vrot.lane.b32.xlu0 %v644, 113
      %v652 = vpop.permute.xlu0 %651
      %653 = vrot.lane.b32.xlu0 %v645, 113
      %v654 = vpop.permute.xlu0 %653
      %v655 = vsel %vm405, %v650, %v652
      %v656 = vsel %vm405, %v652, %v654
      %v659 = vsel %vm252, %v655, 0.0
      %v660 = vsel %vm253, %v656, 0.0
      %661 = vst [vmem:[#allocation3 + $0x60] sm:$0xff] %v659
      %662 = vst [vmem:[#allocation3 + $0x68] sm:$0xff] %v660
      %v663 = vld [vmem:[#allocation2 + $0x8] sm:$0xff]
      %v664 = vld [vmem:[#allocation2 + $0x10] sm:$0xff]
      %v665 = vld [vmem:[#allocation2 + $0x18] sm:$0xff]
      %669 = vrot.lane.b32.xlu0 %v663, 112
      %v670 = vpop.permute.xlu0 %669
      %671 = vrot.lane.b32.xlu0 %v664, 112
      %v672 = vpop.permute.xlu0 %671
      %673 = vrot.lane.b32.xlu0 %v665, 112
      %v674 = vpop.permute.xlu0 %673
      %v675 = vsel %vm429, %v670, %v672
      %v676 = vsel %vm429, %v672, %v674
      %679 = vst [vmem:[#allocation3 + $0x70] sm:$0xff] %v675
      %680 = vst [vmem:[#allocation3 + $0x78] sm:$0xff] %v676
      %v681 = vld [vmem:[#allocation2 + $0x8] sm:$0xff]
      %v682 = vld [vmem:[#allocation2 + $0x10] sm:$0xff]
      %v683 = vld [vmem:[#allocation2 + $0x18] sm:$0xff]
      %687 = vrot.lane.b32.xlu0 %v681, 111
      %v688 = vpop.permute.xlu0 %687
      %689 = vrot.lane.b32.xlu0 %v682, 111
      %v690 = vpop.permute.xlu0 %689
      %691 = vrot.lane.b32.xlu0 %v683, 111
      %v692 = vpop.permute.xlu0 %691
      %v693 = vsel %vm448, %v688, %v690
      %v694 = vsel %vm448, %v690, %v692
      %v697 = vsel %vm254, %v693, 0.0
      %v698 = vsel %vm255, %v694, 0.0
      %699 = vst [vmem:[#allocation3 + $0x80] sm:$0xff] %v697
      %700 = vst [vmem:[#allocation3 + $0x88] sm:$0xff] %v698
      %v701 = vld [vmem:[#allocation3] sm:$0xff]
      %v702 = vld [vmem:[#allocation3 + $0x8] sm:$0xff]
      %v703 = vld [vmem:[#allocation3 + $0x10] sm:$0xff]
      %v704 = vld [vmem:[#allocation3 + $0x18] sm:$0xff]
      %v705 = vld [vmem:[#allocation3 + $0x20] sm:$0xff]
      %v706 = vld [vmem:[#allocation3 + $0x28] sm:$0xff]
      %v707 = vld [vmem:[#allocation3 + $0x30] sm:$0xff]
      %v708 = vld [vmem:[#allocation3 + $0x38] sm:$0xff]
      %v709 = vld [vmem:[#allocation3 + $0x40] sm:$0xff]
      %v710 = vld [vmem:[#allocation3 + $0x48] sm:$0xff]
      %v711 = vld [vmem:[#allocation3 + $0x50] sm:$0xff]
      %v712 = vld [vmem:[#allocation3 + $0x58] sm:$0xff]
      %v713 = vld [vmem:[#allocation3 + $0x60] sm:$0xff]
      %v714 = vld [vmem:[#allocation3 + $0x68] sm:$0xff]
      %v715 = vld [vmem:[#allocation3 + $0x70] sm:$0xff]
      %v716 = vld [vmem:[#allocation3 + $0x78] sm:$0xff]
      %v717 = vld [vmem:[#allocation3 + $0x80] sm:$0xff]
      %v718 = vld [vmem:[#allocation3 + $0x88] sm:$0xff]
      %720 = vset.pattern.permute.xlu0 0
      %721 = vperm.xlu0 %720, %v538
      %v722 = vpop.permute.xlu0 %721
      %vm724 = vcmask 588800
      %v726 = vsel %vm724, %v537, 0
      %728 = vmatpush.msra.mxu0 0.0
      %729 = vmatpush.msra.mxu0 0.0
      %730 = vmatpush.msra.mxu0 0.0
      %731 = vmatpush.msra.mxu0 0.0
      %732 = vmatpush.msra.mxu0 0.0
      %733 = vmatpush.msra.mxu0 0.0
      %734 = vmatpush.msra.mxu0 0.0
      %735 = vmatpush.msra.mxu0 %v717
      %736 = vmatpush.msra.mxu0 %v715
      %737 = vmatpush.msra.mxu0 %v713
      %738 = vmatpush.msra.mxu0 %v711
      %739 = vmatpush.msra.mxu0 %v709
      %740 = vmatpush.msra.mxu0 %v707
      %741 = vmatpush.msra.mxu0 %v705
      %742 = vmatpush.msra.mxu0 %v703
      %743 = vmatpush.msra.mxu0 %v701
      %744 = vmatmul.f32.gmra.mxu0 %v726
      %v745 = vpop.f32.mrf.mxu0
      %v746 = vadd.f32 %v722, %v745
      %747 = vdwg.mxu0
      %748 = vmatpush.msra.mxu0 0.0
      %749 = vmatpush.msra.mxu0 0.0
      %750 = vmatpush.msra.mxu0 0.0
      %751 = vmatpush.msra.mxu0 0.0
      %752 = vmatpush.msra.mxu0 0.0
      %753 = vmatpush.msra.mxu0 0.0
      %754 = vmatpush.msra.mxu0 0.0
      %755 = vmatpush.msra.mxu0 %v718
      %756 = vmatpush.msra.mxu0 %v716
      %757 = vmatpush.msra.mxu0 %v714
      %758 = vmatpush.msra.mxu0 %v712
      %759 = vmatpush.msra.mxu0 %v710
      %760 = vmatpush.msra.mxu0 %v708
      %761 = vmatpush.msra.mxu0 %v706
      %762 = vmatpush.msra.mxu0 %v704
      %763 = vmatpush.msra.mxu0 %v702
      %764 = vmatmul.f32.gmra.mxu0 %v726
      %v765 = vpop.f32.mrf.mxu0
      %v766 = vadd.f32 %v722, %v765
      %767 = vdwg.mxu0
      %v768 = vadd.f32 %v746, %v512
      %v769 = vadd.f32 %v766, %v535
      %v770 = vmax.f32 %v768, 0.0
      %v771 = vmax.f32 %v769, 0.0
      %v774 = vrot.slane %v771, 4
      %v775 = vsel %vm484, %v770, %v774
      %777 = vst [vmem:[%s224] sm:$0xff] %v775
      %p778 = scmp.lt.s32.totalorder %s16, 1
      %s779 = scalar_select %p778, %s16, 1
      %s780 = smul.addr %s779, 2
      %s781 = smul.addr %s780, 4
      %s782 = scalar_lea.vmem %s5, %s781
      // Predicated region
      $region41: #{residual_forward.1} parent=39 // pred_check
        %p783 = pneg %p144
      $region42: #{residual_forward.1} parent=39 // pred_check_branch
        %785 = sbr.rel (%p783) target = $region44
      $region43: #{residual_forward.1} parent=39 // pred_region
        _
      $region44: #{residual_forward.1} parent=39 // pred_fallthru
        _
    $region40: #{residual_forward.1} parent=5 // pred_fallthru
      _
    %p786 = scmp.le.s32.totalorder 2, %s11
    // Predicated region
    $region45: #{residual_forward.1} parent=5 // pred_check
      %p787 = pneg %p786
    $region46: #{residual_forward.1} parent=5 // pred_check_branch
      %789 = sbr.rel (%p787) target = $region48
    $region47: #{residual_forward.1} parent=5 // pred_region
      %s790 = ssub.s32 %s11, 2
      // Predicated region
      $region49: #{residual_forward.1} parent=47 // pred_check
        %p791 = pneg %p150
      $region50: #{residual_forward.1} parent=47 // pred_check_branch
        %793 = sbr.rel (%p791) target = $region52
      $region51: #{residual_forward.1} parent=47 // pred_region
        %p794 = scmp.lt.s32.totalorder %s17, 1
        %s795 = scalar_select %p794, %s17, 1
        %s796 = smul.addr %s795, 2
        %s797 = smul.addr %s796, 4
        %s798 = scalar_lea.vmem %s5, %s797
      $region52: #{residual_forward.1} parent=47 // pred_fallthru
        _
    $region48: #{residual_forward.1} parent=5 // pred_fallthru
      _
  $region6: #{residual_forward.1} parent=0 // loop_footer
    %s15 = sadd.s32 1, %s11
  $region7: #{residual_forward.1} parent=0 // loop_footer_branch
    %10 = sbr.rel target = $region3
  $region8: #{residual_forward.1} parent=0 // loop_exit
    _

</llo_original>
